<compile_context>
chip_gen: v5e
topology: v5e:2x2
jax: 0.10.0
libtpu: 0.0.40
codegen_flags: <defaults>
</compile_context>

<pallas_src>
import functools

import jax
import jax.numpy as jnp
from jax.experimental import pallas as pl
from jax.experimental.pallas import tpu as pltpu

BN_EPS = 1e-5


# ----------------------------- Pallas builders ------------------------------
@functools.lru_cache(maxsize=None)
def _build_conv1x1(B, HW, Cin, Cout, prologue, relu, has_add, out_dtype):
    """Fused 1x1 conv: optional per-channel affine+ReLU prologue (bn1), bf16
    MXU matmul with f32 accumulation, bias, optional residual add, optional ReLU."""

    def kernel(*refs):
        it = iter(refs)
        x_ref = next(it)
        s_ref = t_ref = None
        if prologue:
            s_ref = next(it)
            t_ref = next(it)
        w_ref = next(it)
        b_ref = next(it)
        a_ref = next(it) if has_add else None
        o_ref = next(it)

        x = x_ref[0]                                      # (HW, Cin) bf16
        if prologue:                                      # bn1 -> relu (f32)
            xf = x.astype(jnp.float32) * s_ref[...] + t_ref[...]
            x = jnp.maximum(xf, 0.0).astype(jnp.bfloat16)
        y = jnp.dot(x, w_ref[...], preferred_element_type=jnp.float32)
        y = y + b_ref[...]
        if has_add:
            y = y + a_ref[0].astype(jnp.float32)
        if relu:
            y = jnp.maximum(y, 0.0)
        o_ref[0] = y.astype(out_dtype)

    in_specs = [pl.BlockSpec((1, HW, Cin), lambda i: (i, 0, 0))]
    if prologue:
        in_specs += [pl.BlockSpec((1, Cin), lambda i: (0, 0)),
                     pl.BlockSpec((1, Cin), lambda i: (0, 0))]
    in_specs += [pl.BlockSpec((Cin, Cout), lambda i: (0, 0)),
                 pl.BlockSpec((1, Cout), lambda i: (0, 0))]
    if has_add:
        in_specs += [pl.BlockSpec((1, HW, Cout), lambda i: (i, 0, 0))]

    return jax.jit(pl.pallas_call(
        kernel,
        grid=(B,),
        in_specs=in_specs,
        out_specs=pl.BlockSpec((1, HW, Cout), lambda i: (i, 0, 0)),
        out_shape=jax.ShapeDtypeStruct((B, HW, Cout), out_dtype),
        compiler_params=pltpu.CompilerParams(dimension_semantics=("parallel",)),
    ))


@functools.lru_cache(maxsize=None)
def _build_conv3x3_block(B, HW, C1, C2, Cout, Cskip, second, add_kind,
                         extra_add, relu1, out_dtype):
    """Fused block around a 3x3 conv (stride 1, 'same'), expressed as ONE
    big-K matmul (K = 9*C1) over lane-packed im2col patches:
       y = patches @ W1 + b1 ; [relu] ; [y = y @ W2 + b2] ;
       [+ identity residual | + fused skip-conv residual] ; [+ extra] ; store."""

    def kernel(*refs):
        it = iter(refs)
        x_ref = next(it)
        w1_ref = next(it)
        b1_ref = next(it)
        w2_ref = b2_ref = None
        if second:
            w2_ref = next(it)
            b2_ref = next(it)
        a_ref = xs_ref = ws_ref = bs_ref = e_ref = None
        if add_kind == "ref":
            a_ref = next(it)
        elif add_kind == "skip":
            xs_ref = next(it)
            ws_ref = next(it)
            bs_ref = next(it)
        if extra_add:
            e_ref = next(it)
        o_ref = next(it)

        patch = x_ref[0]                                  # (HW, 9*C1) bf16
        y = jnp.dot(patch, w1_ref[...],
                    preferred_element_type=jnp.float32) + b1_ref[...]
        if relu1:
            y = jnp.maximum(y, 0.0)
        if second:                                        # trailing 1x1 conv
            y = jnp.dot(y.astype(jnp.bfloat16), w2_ref[...],
                        preferred_element_type=jnp.float32) + b2_ref[...]
        if add_kind == "ref":                             # identity residual
            y = y + a_ref[0].astype(jnp.float32)
        elif add_kind == "skip":                          # fused skip conv
            y = y + jnp.dot(xs_ref[0], ws_ref[...],
                            preferred_element_type=jnp.float32) + bs_ref[...]
        if extra_add:                                     # hourglass up2 add
            y = y + e_ref[0].astype(jnp.float32)
        o_ref[0] = y.astype(out_dtype)

    in_specs = [pl.BlockSpec((1, HW, 9 * C1), lambda i: (i, 0, 0)),
                pl.BlockSpec((9 * C1, C2), lambda i: (0, 0)),
                pl.BlockSpec((1, C2), lambda i: (0, 0))]
    if second:
        in_specs += [pl.BlockSpec((C2, Cout), lambda i: (0, 0)),
                     pl.BlockSpec((1, Cout), lambda i: (0, 0))]
    if add_kind == "ref":
        in_specs += [pl.BlockSpec((1, HW, Cout), lambda i: (i, 0, 0))]
    elif add_kind == "skip":
        in_specs += [pl.BlockSpec((1, HW, Cskip), lambda i: (i, 0, 0)),
                     pl.BlockSpec((Cskip, Cout), lambda i: (0, 0)),
                     pl.BlockSpec((1, Cout), lambda i: (0, 0))]
    if extra_add:
        in_specs += [pl.BlockSpec((1, HW, Cout), lambda i: (i, 0, 0))]

    return jax.jit(pl.pallas_call(
        kernel,
        grid=(B,),
        in_specs=in_specs,
        out_specs=pl.BlockSpec((1, HW, Cout), lambda i: (i, 0, 0)),
        out_shape=jax.ShapeDtypeStruct((B, HW, Cout), out_dtype),
        compiler_params=pltpu.CompilerParams(dimension_semantics=("parallel",)),
    ))


@functools.lru_cache(maxsize=None)
def _build_maxpool(B, Ho, Wo, C):
    """2x2 max pool: x is passed (free contiguous reshape) as
    (B, Ho, 2, Wo, 2, C); the kernel reads it ONCE and reduces in-register."""

    def kernel(x_ref, o_ref):
        v = x_ref[0]                                        # (Ho, 2, Wo, 2, C)
        v = jnp.maximum(v[:, :, :, 0, :], v[:, :, :, 1, :])  # (Ho, 2, Wo, C)
        v = jnp.maximum(v[:, 0, :, :], v[:, 1, :, :])        # (Ho, Wo, C)
        o_ref[0] = v.astype(o_ref.dtype)

    return jax.jit(pl.pallas_call(
        kernel,
        grid=(B,),
        in_specs=[pl.BlockSpec((1, Ho, 2, Wo, 2, C),
                               lambda i: (i, 0, 0, 0, 0, 0))],
        out_specs=pl.BlockSpec((1, Ho, Wo, C), lambda i: (i, 0, 0, 0)),
        out_shape=jax.ShapeDtypeStruct((B, Ho, Wo, C), jnp.bfloat16),
        compiler_params=pltpu.CompilerParams(dimension_semantics=("parallel",)),
    ))


# ------------------------------ op wrappers ---------------------------------
def conv1x1_call(x, w, b, *, prologue=None, relu=False, add=None,
                 out_dtype=jnp.bfloat16):
    B, H, W, Cin = x.shape
    HW = H * W
    Cout = w.shape[-1]
    fn = _build_conv1x1(B, HW, Cin, Cout, prologue is not None, relu,
                        add is not None, out_dtype)
    args = [x.reshape(B, HW, Cin)]
    if prologue is not None:
        s, t = prologue
        args += [s.reshape(1, Cin), t.reshape(1, Cin)]
    args += [w, b.reshape(1, Cout)]
    if add is not None:
        args.append(add.reshape(B, HW, Cout))
    return fn(*args).reshape(B, H, W, Cout)


def conv3x3_call(x, w9, b1, *, second=None, add_ref=None, skip=None, extra=None,
                 relu1=True, out_dtype=jnp.bfloat16):
    B, H, W, C1 = x.shape
    HW = H * W
    C2 = w9.shape[-1]
    xp = jnp.pad(x, ((0, 0), (1, 1), (1, 1), (0, 0)))     # 1-pixel halo
    # Lane-packed im2col patches (B, HW, 9*C1), built in plain JAX (fused by XLA
    # under the outer jit); the kernel then does one big-K matmul on the MXU.
    taps = [xp[:, kh:kh + H, kw:kw + W, :]
            for kh in range(3) for kw in range(3)]
    xin = jnp.concatenate(taps, axis=-1).reshape(B, HW, 9 * C1)

    args = [xin, w9, b1.reshape(1, C2)]
    if second is not None:
        w2, b2 = second
        Cout = w2.shape[-1]
        args += [w2, b2.reshape(1, Cout)]
    else:
        Cout = C2
    if add_ref is not None:
        add_kind, Cskip = "ref", 0
        args.append(add_ref.reshape(B, HW, Cout))
    elif skip is not None:
        add_kind = "skip"
        xs, ws, bs = skip
        Cskip = ws.shape[0]
        args += [xs.reshape(B, HW, Cskip), ws, bs.reshape(1, Cout)]
    else:
        add_kind, Cskip = "none", 0
    if extra is not None:
        args.append(extra.reshape(B, HW, Cout))

    fn = _build_conv3x3_block(B, HW, C1, C2, Cout, Cskip,
                              second is not None, add_kind, extra is not None,
                              relu1, out_dtype)
    return fn(*args).reshape(B, H, W, Cout)


def maxpool2x2(x):
    B, H, W, C = x.shape
    Ho, Wo = H // 2, W // 2
    xr = x.reshape(B, Ho, 2, Wo, 2, C)          # free (contiguous) view
    return _build_maxpool(B, Ho, Wo, C)(xr)


def upsample2x_nearest(x):
    # nn.Upsample(scale_factor=2, mode='nearest') — pure replication (glue)
    return jnp.repeat(jnp.repeat(x, 2, axis=1), 2, axis=2)


# --------------------------- parameter construction -------------------------
class KeyGen:
    def __init__(self, seed):
        self._key = jax.random.PRNGKey(seed)

    def __call__(self):
        self._key, sub = jax.random.split(self._key)
        return sub


def _bn_scale_shift(kg, c):
    gamma = 1.0 + 0.1 * jax.random.normal(kg(), (c,), jnp.float32)
    beta = 0.1 * jax.random.normal(kg(), (c,), jnp.float32)
    mean = 0.1 * jax.random.normal(kg(), (c,), jnp.float32)
    var = 1.0 + 0.5 * jax.random.uniform(kg(), (c,), jnp.float32)
    scale = gamma / jnp.sqrt(var + BN_EPS)
    shift = beta - mean * scale
    return scale, shift


def _conv_wb(kg, cin, cout, k):
    fan_in = cin * k * k
    w = jax.random.normal(kg(), (k, k, cin, cout), jnp.float32) / jnp.sqrt(fan_in)
    b = 0.01 * jax.random.normal(kg(), (cout,), jnp.float32)
    return w, b


def make_conv1x1(kg, cin, cout, bn=False):
    w, b = _conv_wb(kg, cin, cout, 1)
    w = w.reshape(cin, cout)
    if bn:  # Conv -> BN(eval) -> ReLU: fold BN into conv (exact)
        s, t = _bn_scale_shift(kg, cout)
        w = w * s
        b = b * s + t
    return {"w": w.astype(jnp.bfloat16), "b": b}


def make_conv3x3(kg, cin, cout, bn=False):
    w, b = _conv_wb(kg, cin, cout, 3)
    if bn:
        s, t = _bn_scale_shift(kg, cout)
        w = w * s
        b = b * s + t
    return {"w": w.reshape(9 * cin, cout).astype(jnp.bfloat16), "b": b}


def make_residual(kg, cin, cout):
    mid = cout // 2
    p = {"need_skip": cin != cout, "mid": mid}
    if p["need_skip"]:
        ws, bs = _conv_wb(kg, cin, cout, 1)
        p["wskip"] = ws.reshape(cin, cout).astype(jnp.bfloat16)
        p["bskip"] = bs
    # bn1 stays as an in-kernel prologue (a ReLU separates it from conv1)
    p["s1"], p["t1"] = _bn_scale_shift(kg, cin)
    # conv1 (1x1) with bn2 folded
    w1, b1 = _conv_wb(kg, cin, mid, 1)
    s2, t2 = _bn_scale_shift(kg, mid)
    p["w1"] = (w1.reshape(cin, mid) * s2).astype(jnp.bfloat16)
    p["b1"] = b1 * s2 + t2
    # conv2 (3x3) with bn3 folded
    w2, b2 = _conv_wb(kg, mid, mid, 3)
    s3, t3 = _bn_scale_shift(kg, mid)
    p["w2"] = (w2 * s3).reshape(9 * mid, mid).astype(jnp.bfloat16)
    p["b2"] = b2 * s3 + t3
    # conv3 (1x1)
    w3, b3 = _conv_wb(kg, mid, cout, 1)
    p["w3"] = w3.reshape(mid, cout).astype(jnp.bfloat16)
    p["b3"] = b3
    return p


def apply_residual(p, x, extra=None):
    # Fused call 1: bn1 -> relu -> conv1(1x1, bn2 folded) -> relu
    h2 = conv1x1_call(x, p["w1"], p["b1"],
                      prologue=(p["s1"], p["t1"]), relu=True)
    # Fused call 2: conv2(3x3, bn3 folded) -> relu -> conv3(1x1)
    #               + skip-conv/identity residual (+ optional extra add)
    if p["need_skip"]:
        return conv3x3_call(h2, p["w2"], p["b2"], second=(p["w3"], p["b3"]),
                            skip=(x, p["wskip"], p["bskip"]), extra=extra)
    return conv3x3_call(h2, p["w2"], p["b2"], second=(p["w3"], p["b3"]),
                        add_ref=x, extra=extra)


def make_hourglass(kg, n, f, increase=0):
    nf = f + increase
    return {
        "n": n,
        "up1": make_residual(kg, f, f),
        "low1": make_residual(kg, f, nf),
        "low2": make_hourglass(kg, n - 1, nf) if n > 1 else make_residual(kg, nf, nf),
        "low3": make_residual(kg, nf, f),
    }


def apply_hourglass(p, x):
    pool1 = maxpool2x2(x)
    low1 = apply_residual(p["low1"], pool1)
    if p["n"] > 1:
        low2 = apply_hourglass(p["low2"], low1)
    else:
        low2 = apply_residual(p["low2"], low1)
    low3 = apply_residual(p["low3"], low2)
    up2 = upsample2x_nearest(low3)
    # up1 = Residual(x); the final up1 + up2 add is fused into its last kernel.
    return apply_residual(p["up1"], x, extra=up2)


def make_posenet(kg, nstack, inp_dim, out_dim, increase=0):
    params = {
        "nstack": nstack,
        "pre0": make_conv3x3(kg, 3, 64, bn=True),
        "pre": [make_residual(kg, 64, 128),
                make_residual(kg, 128, 128),
                make_residual(kg, 128, inp_dim)],
        "hgs": [make_hourglass(kg, 4, inp_dim, increase) for _ in range(nstack)],
        "features": [{"res": make_residual(kg, inp_dim, inp_dim),
                      "conv": make_conv1x1(kg, inp_dim, inp_dim, bn=True)}
                     for _ in range(nstack)],
        "outs": [make_conv1x1(kg, inp_dim, out_dim, bn=False)
                 for _ in range(nstack)],
    }
    # Compose merge_preds(outs(feature)) + merge_features(feature) into ONE
    # inp_dim->inp_dim conv (all three are affine, no ReLU in between — exact):
    #   x_next = x + feature @ (W_out W_mp + W_mf) + (b_out W_mp + b_mp + b_mf)
    merges = []
    for i in range(nstack - 1):
        w_mf, b_mf = _conv_wb(kg, inp_dim, inp_dim, 1)
        w_mf = w_mf.reshape(inp_dim, inp_dim)
        w_mp, b_mp = _conv_wb(kg, out_dim, inp_dim, 1)
        w_mp = w_mp.reshape(out_dim, inp_dim)
        w_out = params["outs"][i]["w"].astype(jnp.float32)
        b_out = params["outs"][i]["b"]
        w_merge = w_out @ w_mp + w_mf
        b_merge = b_out @ w_mp + b_mp + b_mf
        merges.append({"w": w_merge.astype(jnp.bfloat16), "b": b_merge})
    params["merge"] = merges
    return params


def posenet_forward(params, imgs):
    """imgs: (B, H, W, 3) float32 channels-last (PyTorch permutes to NCHW; equivalent)."""
    x = imgs.astype(jnp.bfloat16)
    # pre: Conv(3,64,3,bn,relu) + 3 residuals
    x = conv3x3_call(x, params["pre0"]["w"], params["pre0"]["b"], relu1=True)
    for rp in params["pre"]:
        x = apply_residual(rp, x)

    combined_hm_preds = []
    for i in range(params["nstack"]):
        hg = apply_hourglass(params["hgs"][i], x)
        feature = apply_residual(params["features"][i]["res"], hg)
        fc = params["features"][i]["conv"]
        feature = conv1x1_call(feature, fc["w"], fc["b"], relu=True)
        op = params["outs"][i]
        preds = conv1x1_call(feature, op["w"], op["b"], relu=False,
                             out_dtype=jnp.float32)
        combined_hm_preds.append(preds)
        if i < params["nstack"] - 1:
            mg = params["merge"][i]
            # x + merge_preds(preds) + merge_features(feature), as one fused conv
            x = conv1x1_call(feature, mg["w"], mg["b"], relu=False, add=x)

    # Match torch.stack(combined_hm_preds, 1) in NCHW: (B, nstack, out_dim, H, W)
    return jnp.stack([jnp.transpose(p, (0, 3, 1, 2)) for p in combined_hm_preds],
                     axis=1)


# --------------------------------- main --------------------------------------
if __name__ == "__main__":
    NSTACK, INP_DIM, OUT_DIM = 2, 32, 8
    B, H, W = 2, 16, 16  # H, W divisible by 2**4 for the depth-4 hourglass

    params = make_posenet(KeyGen(0), NSTACK, INP_DIM, OUT_DIM)
    imgs = jax.random.uniform(jax.random.PRNGKey(0), (B, H, W, 3), jnp.float32)

    fwd = jax.jit(lambda im: posenet_forward(params, im))
    out = jax.block_until_ready(fwd(imgs))

    assert out.shape == (B, NSTACK, OUT_DIM, H, W), out.shape
    assert bool(jnp.all(jnp.isfinite(out)))
    print("KERNEL_OK")
</pallas_src>

<mosaic_0001>
module attributes {stable_mosaic.version = 11 : i64} {
  func.func @kernel(%arg0: i32, %arg1: memref<1x256x27xbf16, #tpu.memory_space<vmem>>, %arg2: memref<27x64xbf16, #tpu.memory_space<vmem>>, %arg3: memref<1x64xf32, #tpu.memory_space<vmem>>, %arg4: memref<1x256x64xbf16, #tpu.memory_space<vmem>>) attributes {dimension_semantics = [#tpu.dimension_semantics<parallel>], iteration_bounds = array<i64: 2>, scalar_prefetch = 0 : i64, scratch_operands = 0 : i64, tpu.core_type = #tpu.core_type<tc>, window_params = [{transform_indices = @transform_0, window_bounds = array<i64: 1, 256, 27>}, {pipeline_mode = #tpu.pipeline_mode<synchronous>, transform_indices = @transform_1, window_bounds = array<i64: 27, 64>}, {pipeline_mode = #tpu.pipeline_mode<synchronous>, transform_indices = @transform_2, window_bounds = array<i64: 1, 64>}, {transform_indices = @transform_3, window_bounds = array<i64: 1, 256, 64>}]} {
    %c0 = arith.constant 0 : index
    %c0_0 = arith.constant 0 : index
    %c0_1 = arith.constant 0 : index
    %0 = vector.load %arg1[%c0, %c0_0, %c0_1] : memref<1x256x27xbf16, #tpu.memory_space<vmem>>, vector<1x256x27xbf16>
    %1 = vector.shape_cast %0 : vector<1x256x27xbf16> to vector<256x27xbf16>
    %c0_2 = arith.constant 0 : index
    %c0_3 = arith.constant 0 : index
    %2 = vector.load %arg2[%c0_2, %c0_3] : memref<27x64xbf16, #tpu.memory_space<vmem>>, vector<27x64xbf16>
    %cst = arith.constant dense<0.000000e+00> : vector<256x64xf32>
    %3 = tpu.matmul %1, %2, %cst {dimension_numbers = #tpu.dot_dimension_numbers<[1], [0], [0], [1], [0, 0, 1, 1], [], []>} : vector<256x27xbf16>, vector<27x64xbf16>, vector<256x64xf32> -> vector<256x64xf32>
    %c0_4 = arith.constant 0 : index
    %c0_5 = arith.constant 0 : index
    %4 = vector.load %arg3[%c0_4, %c0_5] : memref<1x64xf32, #tpu.memory_space<vmem>>, vector<1x64xf32>
    %5 = vector.broadcast %4 : vector<1x64xf32> to vector<256x64xf32>
    %6 = arith.addf %3, %5 : vector<256x64xf32>
    %cst_6 = arith.constant 0.000000e+00 : f32
    %7 = vector.broadcast %cst_6 : f32 to vector<256x64xf32>
    %8 = arith.maximumf %6, %7 : vector<256x64xf32>
    %9 = arith.truncf %8 : vector<256x64xf32> to vector<256x64xbf16>
    %c0_7 = arith.constant 0 : index
    %c0_8 = arith.constant 0 : index
    %c0_9 = arith.constant 0 : index
    %10 = vector.load %arg4[%c0_7, %c0_8, %c0_9] : memref<1x256x64xbf16, #tpu.memory_space<vmem>>, vector<1x256x64xbf16>
    %11 = vector.shape_cast %10 : vector<1x256x64xbf16> to vector<256x64xbf16>
    %12 = vector.shape_cast %9 : vector<256x64xbf16> to vector<1x256x64xbf16>
    tpu.vector_store %arg4[%c0_7, %c0_8, %c0_9], %12 {strides = array<i32>} : memref<1x256x64xbf16, #tpu.memory_space<vmem>>, vector<1x256x64xbf16>,
    return
  }
  func.func @transform_0(%arg0: i32) -> (i32, i32, i32) {
    %c0_i32 = arith.constant 0 : i32
    %c0_i32_0 = arith.constant 0 : i32
    %c0_i32_1 = arith.constant 0 : i32
    return %arg0, %c0_i32, %c0_i32_0 : i32, i32, i32
  }
  func.func @transform_1(%arg0: i32) -> (i32, i32) {
    %c0_i32 = arith.constant 0 : i32
    %c0_i32_0 = arith.constant 0 : i32
    %c0_i32_1 = arith.constant 0 : i32
    return %c0_i32, %c0_i32_0 : i32, i32
  }
  func.func @transform_2(%arg0: i32) -> (i32, i32) {
    %c0_i32 = arith.constant 0 : i32
    %c0_i32_0 = arith.constant 0 : i32
    %c0_i32_1 = arith.constant 0 : i32
    return %c0_i32, %c0_i32_0 : i32, i32
  }
  func.func @transform_3(%arg0: i32) -> (i32, i32, i32) {
    %c0_i32 = arith.constant 0 : i32
    %c0_i32_0 = arith.constant 0 : i32
    %c0_i32_1 = arith.constant 0 : i32
    return %arg0, %c0_i32, %c0_i32_0 : i32, i32, i32
  }
}

</mosaic_0001>

<llo_original>
// kernel: tpu_custom_call.1
$region0: #{tpu_custom_call.1}
  #allocation0 [shape = 'u32[]', space=smem, size = 0x4, offset = 0x4, fixed_abs, tag = 'smem constant byte address 0x4 - core index']
  #allocation1 [shape = 'u32[72,128]{1,0:T(1,128)}', space=vmem, size = 0x9000, scoped, tag = 'internal scratch']
  %s0 = inlined_call_operand.vmem [shape: bf16[2,256,27], index: 0, kind: input, shape index: {}]
  %s1 = inlined_call_operand.vmem [shape: bf16[27,64], index: 1, kind: input, shape index: {}]
  %s2 = inlined_call_operand.vmem [shape: f32[1,64], index: 2, kind: input, shape index: {}]
  %s3 = inlined_call_operand.vmem [shape: bf16[2,256,64], index: 3, kind: output, shape index: {}]
  %s4 = sld [smem:[#allocation0]]
  $region45: #{tpu_custom_call.1} parent=0
    _
  %s6 = ssub.s32 1, %s4
  %s7 = scalar_select 0, %s6, %s4
  loop: start=0, step=1, limit=4
  $region2: #{tpu_custom_call.1} parent=0 // loop_pre_header
    _
  $region3: #{tpu_custom_call.1} parent=0 // loop_header
    %s9 = sphi 0, %s13
    %p10 = scmp.ge.s32.totalorder %s9, 4
    %s19 = sphi 0, %s21
    %s22 = sphi 0, %s19
    %s23 = sphi 0, %s22
    %s39 = sphi 0, %s23
    %s43 = sphi 0, %s43
    %s45 = sphi 0, %s43
    %s46 = sphi 0, %s45
    %s60 = sphi 0, %s46
    %s64 = sphi 0, %s64
    %s66 = sphi 0, %s64
    %s67 = sphi 0, %s66
    %s81 = sphi 0, %s67
    %s87 = sphi 0, %s89
    %s90 = sphi 0, %s87
    %s91 = sphi 0, %s90
    %s107 = sphi 0, %s91
  $region4: #{tpu_custom_call.1} parent=0 // loop_header_branch
    %12 = sbr.rel (%p10) target = $region8
  $region5: #{tpu_custom_call.1} parent=0 // loop_body
    %s14 = ssub.s32 %s9, 1
    %s15 = ssub.s32 %s9, 2
    %s16 = sadd.s32 %s9, 1
    %s17 = ssub.s32 %s9, %s16
    %p18 = scmp.eq.s32.totalorder %s17, 0
    %s20 = sadd.s32 %s19, 1
    %s21 = scalar_select %p18, %s19, %s20
    %p24 = pneg %p18
    %p25 = scmp.eq.s32.totalorder %s9, 1
    %p26 = por %p24, %p25
    %p27 = scmp.ne.s32.totalorder %s19, %s22
    %p28 = scmp.eq.s32.totalorder %s9, 0
    %p29 = por %p27, %p28
    %p30 = scmp.ne.s32.totalorder %s19, %s22
    %p31 = scmp.eq.s32.totalorder %s14, 1
    %p32 = por %p30, %p31
    %p33 = scmp.ne.s32.totalorder %s22, %s23
    %p34 = scmp.eq.s32.totalorder %s14, 0
    %p35 = por %p33, %p34
    %p36 = scmp.ne.s32.totalorder %s22, %s23
    %p37 = scmp.eq.s32.totalorder %s15, 1
    %p38 = por %p36, %p37
    %p40 = scmp.ne.s32.totalorder %s23, %s39
    %p41 = scmp.eq.s32.totalorder %s15, 0
    %p42 = por %p40, %p41
    %s44 = sadd.s32 %s43, 1
    %p47 = scmp.eq.s32.totalorder %s9, 1
    %p48 = scmp.ne.s32.totalorder %s43, %s45
    %p49 = scmp.eq.s32.totalorder %s9, 0
    %p50 = por %p48, %p49
    %p51 = scmp.ne.s32.totalorder %s43, %s45
    %p52 = scmp.eq.s32.totalorder %s14, 1
    %p53 = por %p51, %p52
    %p54 = scmp.ne.s32.totalorder %s45, %s46
    %p55 = scmp.eq.s32.totalorder %s14, 0
    %p56 = por %p54, %p55
    %p57 = scmp.ne.s32.totalorder %s45, %s46
    %p58 = scmp.eq.s32.totalorder %s15, 1
    %p59 = por %p57, %p58
    %p61 = scmp.ne.s32.totalorder %s46, %s60
    %p62 = scmp.eq.s32.totalorder %s15, 0
    %p63 = por %p61, %p62
    %s65 = sadd.s32 %s64, 1
    %p68 = scmp.eq.s32.totalorder %s9, 1
    %p69 = scmp.ne.s32.totalorder %s64, %s66
    %p70 = scmp.eq.s32.totalorder %s9, 0
    %p71 = por %p69, %p70
    %p72 = scmp.ne.s32.totalorder %s64, %s66
    %p73 = scmp.eq.s32.totalorder %s14, 1
    %p74 = por %p72, %p73
    %p75 = scmp.ne.s32.totalorder %s66, %s67
    %p76 = scmp.eq.s32.totalorder %s14, 0
    %p77 = por %p75, %p76
    %p78 = scmp.ne.s32.totalorder %s66, %s67
    %p79 = scmp.eq.s32.totalorder %s15, 1
    %p80 = por %p78, %p79
    %p82 = scmp.ne.s32.totalorder %s67, %s81
    %p83 = scmp.eq.s32.totalorder %s15, 0
    %p84 = por %p82, %p83
    %s85 = ssub.s32 %s9, %s16
    %p86 = scmp.eq.s32.totalorder %s85, 0
    %s88 = sadd.s32 %s87, 1
    %s89 = scalar_select %p86, %s87, %s88
    %p92 = pneg %p86
    %p93 = scmp.eq.s32.totalorder %s9, 1
    %p94 = por %p92, %p93
    %p95 = scmp.ne.s32.totalorder %s87, %s90
    %p96 = scmp.eq.s32.totalorder %s9, 0
    %p97 = por %p95, %p96
    %p98 = scmp.ne.s32.totalorder %s87, %s90
    %p99 = scmp.eq.s32.totalorder %s14, 1
    %p100 = por %p98, %p99
    %p101 = scmp.ne.s32.totalorder %s90, %s91
    %p102 = scmp.eq.s32.totalorder %s14, 0
    %p103 = por %p101, %p102
    %p104 = scmp.ne.s32.totalorder %s90, %s91
    %p105 = scmp.eq.s32.totalorder %s15, 1
    %p106 = por %p104, %p105
    %p108 = scmp.ne.s32.totalorder %s91, %s107
    %p109 = scmp.eq.s32.totalorder %s15, 0
    %p110 = por %p108, %p109
    %p111 = scmp.le.s32.totalorder 1, %s9
    %p112 = scmp.lt.s32.totalorder %s9, 3
    %p113 = pnand %p111, %p112
    %p114 = pneg %p113
    // Predicated region
    $region9: #{tpu_custom_call.1} parent=5 // pred_check
      _
    $region10: #{tpu_custom_call.1} parent=5 // pred_check_branch
      %116 = sbr.rel (%p113) target = $region12
    $region11: #{tpu_custom_call.1} parent=5 // pred_region
      %s117 = ssub.s32 %s9, 1
      // Predicated region
      $region13: #{tpu_custom_call.1} parent=11 // pred_check
        %p118 = pneg %p56
      $region14: #{tpu_custom_call.1} parent=11 // pred_check_branch
        %120 = sbr.rel (%p118) target = $region16
      $region15: #{tpu_custom_call.1} parent=11 // pred_region
        _
      $region16: #{tpu_custom_call.1} parent=11 // pred_fallthru
        _
      // Predicated region
      $region17: #{tpu_custom_call.1} parent=11 // pred_check
        %p121 = pneg %p77
      $region18: #{tpu_custom_call.1} parent=11 // pred_check_branch
        %123 = sbr.rel (%p121) target = $region20
      $region19: #{tpu_custom_call.1} parent=11 // pred_region
        _
      $region20: #{tpu_custom_call.1} parent=11 // pred_fallthru
        _
    $region12: #{tpu_custom_call.1} parent=5 // pred_fallthru
      _
    %p124 = scmp.lt.s32.totalorder %s9, 2
    // Predicated region
    $region21: #{tpu_custom_call.1} parent=5 // pred_check
      %p125 = pneg %p124
    $region22: #{tpu_custom_call.1} parent=5 // pred_check_branch
      %127 = sbr.rel (%p125) target = $region24
    $region23: #{tpu_custom_call.1} parent=5 // pred_region
      // Predicated region
      $region25: #{tpu_custom_call.1} parent=23 // pred_check
        %p128 = pneg %p29
      $region26: #{tpu_custom_call.1} parent=23 // pred_check_branch
        %130 = sbr.rel (%p128) target = $region28
      $region27: #{tpu_custom_call.1} parent=23 // pred_region
        %p131 = scmp.lt.s32.totalorder %s9, 1
        %s132 = scalar_select %p131, %s9, 1
        %s133 = smul.addr %s132, 32
        %s134 = smul.addr %s133, 4
        %s135 = scalar_lea.vmem %s0, %s134
      $region28: #{tpu_custom_call.1} parent=23 // pred_fallthru
        _
    $region24: #{tpu_custom_call.1} parent=5 // pred_fallthru
      _
    %p136 = scmp.le.s32.totalorder 1, %s9
    %p137 = scmp.lt.s32.totalorder %s9, 3
    %p138 = pnand %p136, %p137
    %p139 = pneg %p138
    // Predicated region
    $region29: #{tpu_custom_call.1} parent=5 // pred_check
      _
    $region30: #{tpu_custom_call.1} parent=5 // pred_check_branch
      %141 = sbr.rel (%p138) target = $region32
    $region31: #{tpu_custom_call.1} parent=5 // pred_region
      %s142 = ssub.s32 %s9, 1
      %p143 = scmp.lt.s32.totalorder %s14, 1
      %s144 = scalar_select %p143, %s14, 1
      %s145 = smul.addr %s144, 32
      %s146 = smul.addr %s145, 4
      %s147 = scalar_lea.vmem %s0, %s146
      %p148 = pneg %p35
      %p149 = pneg %p32
      %p150 = pneg %p56
      %p151 = pneg %p53
      %p152 = pneg %p77
      %p153 = pneg %p74
      %p154 = pneg %p103
      %p155 = pneg %p100
      %p156 = scmp.lt.s32.totalorder %s14, 1
      %s157 = scalar_select %p156, %s14, 1
      %s158 = smul.addr %s157, 32
      %s159 = smul.addr %s158, 4
      %s160 = scalar_lea.vmem %s3, %s159
      %p161 = scmp.lt.s32.totalorder %s14, 1
      %s162 = scalar_select %p161, %s14, 1
      %s163 = smul.addr %s162, 32
      %s164 = smul.addr %s163, 4
      %s165 = scalar_lea.vmem %s0, %s164
      %p166 = scmp.lt.s32.totalorder %s14, 1
      %s167 = scalar_select %p166, %s14, 1
      %s168 = smul.addr %s167, 32
      %s169 = smul.addr %s168, 4
      %s170 = scalar_lea.vmem %s3, %s169
      %v172 = vld [vmem:[%s165] sm:$0xf]
      %v173 = vld [vmem:[%s165 + $0x4] sm:$0xf]
      %v174 = vld [vmem:[%s165 + $0x8] sm:$0xf]
      %v175 = vld [vmem:[%s165 + $0xc] sm:$0xf]
      %v176 = vld [vmem:[%s165 + $0x10] sm:$0xf]
      %v177 = vld [vmem:[%s165 + $0x14] sm:$0xf]
      %v178 = vld [vmem:[%s165 + $0x18] sm:$0xf]
      %v179 = vld [vmem:[%s165 + $0x1c] sm:$0xf]
      %v180 = vld [vmem:[%s165 + $0x20] sm:$0xf]
      %v181 = vld [vmem:[%s165 + $0x24] sm:$0xf]
      %v182 = vld [vmem:[%s165 + $0x28] sm:$0xf]
      %v183 = vld [vmem:[%s165 + $0x2c] sm:$0xf]
      %v184 = vld [vmem:[%s165 + $0x30] sm:$0xf]
      %v185 = vld [vmem:[%s165 + $0x34] sm:$0xf]
      %v186 = vld [vmem:[%s165 + $0x38] sm:$0xf]
      %v187 = vld [vmem:[%s165 + $0x3c] sm:$0xf]
      %v188 = vld [vmem:[%s165 + $0x40] sm:$0xf]
      %v189 = vld [vmem:[%s165 + $0x44] sm:$0xf]
      %v190 = vld [vmem:[%s165 + $0x48] sm:$0xf]
      %v191 = vld [vmem:[%s165 + $0x4c] sm:$0xf]
      %v192 = vld [vmem:[%s165 + $0x50] sm:$0xf]
      %v193 = vld [vmem:[%s165 + $0x54] sm:$0xf]
      %v194 = vld [vmem:[%s165 + $0x58] sm:$0xf]
      %v195 = vld [vmem:[%s165 + $0x5c] sm:$0xf]
      %v196 = vld [vmem:[%s165 + $0x60] sm:$0xf]
      %v197 = vld [vmem:[%s165 + $0x64] sm:$0xf]
      %v198 = vld [vmem:[%s165 + $0x68] sm:$0xf]
      %v199 = vld [vmem:[%s165 + $0x6c] sm:$0xf]
      %v200 = vld [vmem:[%s165 + $0x70] sm:$0xf]
      %v201 = vld [vmem:[%s165 + $0x74] sm:$0xf]
      %v202 = vld [vmem:[%s165 + $0x78] sm:$0xf]
      %v203 = vld [vmem:[%s165 + $0x7c] sm:$0xf]
      %v204 = vld [vmem:[%s1] sm:$0xf]
      %v205 = vld [vmem:[%s1 + $0x4] sm:$0xf]
      %v206 = vld [vmem:[%s1 + $0x8] sm:$0xf]
      %v207 = vld [vmem:[%s1 + $0xc] sm:$0x3]
      %v208 = vld [vmem:[%s2] sm:$0x1]
      %v210 = vperm.slane %v208, 0
      %v244 = vunpack.c.l.b16 %v172
      %v245 = vunpack.c.l.b16 %v173
      %v246 = vunpack.c.l.b16 %v174
      %v247 = vunpack.c.l.b16 %v175
      %v248 = vunpack.c.l.b16 %v176
      %v249 = vunpack.c.l.b16 %v177
      %v250 = vunpack.c.l.b16 %v178
      %v251 = vunpack.c.l.b16 %v179
      %v252 = vunpack.c.l.b16 %v180
      %v253 = vunpack.c.l.b16 %v181
      %v254 = vunpack.c.l.b16 %v182
      %v255 = vunpack.c.l.b16 %v183
      %v256 = vunpack.c.l.b16 %v184
      %v257 = vunpack.c.l.b16 %v185
      %v258 = vunpack.c.l.b16 %v186
      %v259 = vunpack.c.l.b16 %v187
      %v260 = vunpack.c.l.b16 %v188
      %v261 = vunpack.c.l.b16 %v189
      %v262 = vunpack.c.l.b16 %v190
      %v263 = vunpack.c.l.b16 %v191
      %v264 = vunpack.c.l.b16 %v192
      %v265 = vunpack.c.l.b16 %v193
      %v266 = vunpack.c.l.b16 %v194
      %v267 = vunpack.c.l.b16 %v195
      %v268 = vunpack.c.l.b16 %v196
      %v269 = vunpack.c.l.b16 %v197
      %v270 = vunpack.c.l.b16 %v198
      %v271 = vunpack.c.l.b16 %v199
      %v272 = vunpack.c.l.b16 %v200
      %v273 = vunpack.c.l.b16 %v201
      %v274 = vunpack.c.l.b16 %v202
      %v275 = vunpack.c.l.b16 %v203
      %v276 = vpack.c.b16 %v245, %v244
      %v277 = vpack.c.b16 %v247, %v246
      %v278 = vpack.c.b16 %v249, %v248
      %v279 = vpack.c.b16 %v251, %v250
      %v280 = vpack.c.b16 %v253, %v252
      %v281 = vpack.c.b16 %v255, %v254
      %v282 = vpack.c.b16 %v257, %v256
      %v283 = vpack.c.b16 %v259, %v258
      %v284 = vpack.c.b16 %v261, %v260
      %v285 = vpack.c.b16 %v263, %v262
      %v286 = vpack.c.b16 %v265, %v264
      %v287 = vpack.c.b16 %v267, %v266
      %v288 = vpack.c.b16 %v269, %v268
      %v289 = vpack.c.b16 %v271, %v270
      %v290 = vpack.c.b16 %v273, %v272
      %v291 = vpack.c.b16 %v275, %v274
      %v296 = vunpack.c.l.b16 %v204
      %v297 = vunpack.c.l.b16 %v205
      %v298 = vunpack.c.l.b16 %v206
      %v299 = vunpack.c.l.b16 %v207
      %v300 = vpack.c.b16 %v297, %v296
      %v301 = vpack.c.b16 %v299, %v298
      %vm303 = vcmask 220160
      %v305 = vsel %vm303, %v276, 0
      %v308 = vsel %vm303, %v277, 0
      %v311 = vsel %vm303, %v278, 0
      %v314 = vsel %vm303, %v279, 0
      %v317 = vsel %vm303, %v280, 0
      %v320 = vsel %vm303, %v281, 0
      %v323 = vsel %vm303, %v282, 0
      %v326 = vsel %vm303, %v283, 0
      %v329 = vsel %vm303, %v284, 0
      %v332 = vsel %vm303, %v285, 0
      %v335 = vsel %vm303, %v286, 0
      %v338 = vsel %vm303, %v287, 0
      %v341 = vsel %vm303, %v288, 0
      %v344 = vsel %vm303, %v289, 0
      %v347 = vsel %vm303, %v290, 0
      %v350 = vsel %vm303, %v291, 0
      %vm352 = vcmask 1044480
      %vm353 = vcmask 1045504
      %v354 = vsel %vm352, 4294967295, 65535
      %v355 = vsel %vm353, %v354, 0
      %v357 = vand.u32 %v301, %v355
      %359 = vmatpush.bf16.msra.mxu0 0
      %360 = vmatpush.bf16.msra.mxu0 0
      %361 = vmatpush.bf16.msra.mxu0 0
      %362 = vmatpush.bf16.msra.mxu0 0
      %363 = vmatpush.bf16.msra.mxu0 0
      %364 = vmatpush.bf16.msra.mxu0 0
      %365 = vmatpush.bf16.msra.mxu0 %v357
      %366 = vmatpush.bf16.msra.mxu0 %v300
      %367 = vmatmul.bf16.gmra.mxu0 %v305
      %v368 = vpop.f32.mrf.mxu0
      %v369 = vadd.f32 %v210, %v368
      %v370 = vpop.f32.mrf.mxu0
      %v371 = vadd.f32 %v210, %v370
      %372 = vmatmul.bf16.gmra.mxu0 %v308
      %v373 = vpop.f32.mrf.mxu0
      %v374 = vadd.f32 %v210, %v373
      %v375 = vpop.f32.mrf.mxu0
      %v376 = vadd.f32 %v210, %v375
      %377 = vmatmul.bf16.gmra.mxu0 %v311
      %v378 = vpop.f32.mrf.mxu0
      %v379 = vadd.f32 %v210, %v378
      %v380 = vpop.f32.mrf.mxu0
      %v381 = vadd.f32 %v210, %v380
      %382 = vmatmul.bf16.gmra.mxu0 %v314
      %v383 = vpop.f32.mrf.mxu0
      %v384 = vadd.f32 %v210, %v383
      %v385 = vpop.f32.mrf.mxu0
      %v386 = vadd.f32 %v210, %v385
      %387 = vmatmul.bf16.gmra.mxu0 %v317
      %v388 = vpop.f32.mrf.mxu0
      %v389 = vadd.f32 %v210, %v388
      %v390 = vpop.f32.mrf.mxu0
      %v391 = vadd.f32 %v210, %v390
      %392 = vmatmul.bf16.gmra.mxu0 %v320
      %v393 = vpop.f32.mrf.mxu0
      %v394 = vadd.f32 %v210, %v393
      %v395 = vpop.f32.mrf.mxu0
      %v396 = vadd.f32 %v210, %v395
      %397 = vmatmul.bf16.gmra.mxu0 %v323
      %v398 = vpop.f32.mrf.mxu0
      %v399 = vadd.f32 %v210, %v398
      %v400 = vpop.f32.mrf.mxu0
      %v401 = vadd.f32 %v210, %v400
      %402 = vmatmul.bf16.gmra.mxu0 %v326
      %v403 = vpop.f32.mrf.mxu0
      %v404 = vadd.f32 %v210, %v403
      %v405 = vpop.f32.mrf.mxu0
      %v406 = vadd.f32 %v210, %v405
      %407 = vmatmul.bf16.gmra.mxu0 %v329
      %v408 = vpop.f32.mrf.mxu0
      %v409 = vadd.f32 %v210, %v408
      %v410 = vpop.f32.mrf.mxu0
      %v411 = vadd.f32 %v210, %v410
      %412 = vmatmul.bf16.gmra.mxu0 %v332
      %v413 = vpop.f32.mrf.mxu0
      %v414 = vadd.f32 %v210, %v413
      %v415 = vpop.f32.mrf.mxu0
      %v416 = vadd.f32 %v210, %v415
      %417 = vmatmul.bf16.gmra.mxu0 %v335
      %v418 = vpop.f32.mrf.mxu0
      %v419 = vadd.f32 %v210, %v418
      %v420 = vpop.f32.mrf.mxu0
      %v421 = vadd.f32 %v210, %v420
      %422 = vmatmul.bf16.gmra.mxu0 %v338
      %v423 = vpop.f32.mrf.mxu0
      %v424 = vadd.f32 %v210, %v423
      %v425 = vpop.f32.mrf.mxu0
      %v426 = vadd.f32 %v210, %v425
      %427 = vmatmul.bf16.gmra.mxu0 %v341
      %v428 = vpop.f32.mrf.mxu0
      %v429 = vadd.f32 %v210, %v428
      %v430 = vpop.f32.mrf.mxu0
      %v431 = vadd.f32 %v210, %v430
      %432 = vmatmul.bf16.gmra.mxu0 %v344
      %v433 = vpop.f32.mrf.mxu0
      %v434 = vadd.f32 %v210, %v433
      %v435 = vpop.f32.mrf.mxu0
      %v436 = vadd.f32 %v210, %v435
      %437 = vmatmul.bf16.gmra.mxu0 %v347
      %v438 = vpop.f32.mrf.mxu0
      %v439 = vadd.f32 %v210, %v438
      %v440 = vpop.f32.mrf.mxu0
      %v441 = vadd.f32 %v210, %v440
      %442 = vmatmul.bf16.gmra.mxu0 %v350
      %v443 = vpop.f32.mrf.mxu0
      %v444 = vadd.f32 %v210, %v443
      %v445 = vpop.f32.mrf.mxu0
      %v446 = vadd.f32 %v210, %v445
      %447 = vdwg.mxu0
      %v448 = vmax.f32 %v369, 0.0
      %v449 = vmax.f32 %v371, 0.0
      %v450 = vmax.f32 %v374, 0.0
      %v451 = vmax.f32 %v376, 0.0
      %v452 = vmax.f32 %v379, 0.0
      %v453 = vmax.f32 %v381, 0.0
      %v454 = vmax.f32 %v384, 0.0
      %v455 = vmax.f32 %v386, 0.0
      %v456 = vmax.f32 %v389, 0.0
      %v457 = vmax.f32 %v391, 0.0
      %v458 = vmax.f32 %v394, 0.0
      %v459 = vmax.f32 %v396, 0.0
      %v460 = vmax.f32 %v399, 0.0
      %v461 = vmax.f32 %v401, 0.0
      %v462 = vmax.f32 %v404, 0.0
      %v463 = vmax.f32 %v406, 0.0
      %v464 = vmax.f32 %v409, 0.0
      %v465 = vmax.f32 %v411, 0.0
      %v466 = vmax.f32 %v414, 0.0
      %v467 = vmax.f32 %v416, 0.0
      %v468 = vmax.f32 %v419, 0.0
      %v469 = vmax.f32 %v421, 0.0
      %v470 = vmax.f32 %v424, 0.0
      %v471 = vmax.f32 %v426, 0.0
      %v472 = vmax.f32 %v429, 0.0
      %v473 = vmax.f32 %v431, 0.0
      %v474 = vmax.f32 %v434, 0.0
      %v475 = vmax.f32 %v436, 0.0
      %v476 = vmax.f32 %v439, 0.0
      %v477 = vmax.f32 %v441, 0.0
      %v478 = vmax.f32 %v444, 0.0
      %v479 = vmax.f32 %v446, 0.0
      %v480 = vpack.c.bf16 %v448, %v448
      %v481 = vpack.c.bf16 %v449, %v449
      %v482 = vpack.c.bf16 %v450, %v450
      %v483 = vpack.c.bf16 %v451, %v451
      %v484 = vpack.c.bf16 %v452, %v452
      %v485 = vpack.c.bf16 %v453, %v453
      %v486 = vpack.c.bf16 %v454, %v454
      %v487 = vpack.c.bf16 %v455, %v455
      %v488 = vpack.c.bf16 %v456, %v456
      %v489 = vpack.c.bf16 %v457, %v457
      %v490 = vpack.c.bf16 %v458, %v458
      %v491 = vpack.c.bf16 %v459, %v459
      %v492 = vpack.c.bf16 %v460, %v460
      %v493 = vpack.c.bf16 %v461, %v461
      %v494 = vpack.c.bf16 %v462, %v462
      %v495 = vpack.c.bf16 %v463, %v463
      %v496 = vpack.c.bf16 %v464, %v464
      %v497 = vpack.c.bf16 %v465, %v465
      %v498 = vpack.c.bf16 %v466, %v466
      %v499 = vpack.c.bf16 %v467, %v467
      %v500 = vpack.c.bf16 %v468, %v468
      %v501 = vpack.c.bf16 %v469, %v469
      %v502 = vpack.c.bf16 %v470, %v470
      %v503 = vpack.c.bf16 %v471, %v471
      %v504 = vpack.c.bf16 %v472, %v472
      %v505 = vpack.c.bf16 %v473, %v473
      %v506 = vpack.c.bf16 %v474, %v474
      %v507 = vpack.c.bf16 %v475, %v475
      %v508 = vpack.c.bf16 %v476, %v476
      %v509 = vpack.c.bf16 %v477, %v477
      %v510 = vpack.c.bf16 %v478, %v478
      %v511 = vpack.c.bf16 %v479, %v479
      %vm512 = vcmask 519168
      %513 = vst.msk [vmem:[%s170] sm:$0xf] %vm512, %v480
      %514 = vst.msk [vmem:[%s170 + $0x4] sm:$0xf] %vm512, %v481
      %515 = vst.msk [vmem:[%s170 + $0x8] sm:$0xf] %vm512, %v482
      %516 = vst.msk [vmem:[%s170 + $0xc] sm:$0xf] %vm512, %v483
      %517 = vst.msk [vmem:[%s170 + $0x10] sm:$0xf] %vm512, %v484
      %518 = vst.msk [vmem:[%s170 + $0x14] sm:$0xf] %vm512, %v485
      %519 = vst.msk [vmem:[%s170 + $0x18] sm:$0xf] %vm512, %v486
      %520 = vst.msk [vmem:[%s170 + $0x1c] sm:$0xf] %vm512, %v487
      %521 = vst.msk [vmem:[%s170 + $0x20] sm:$0xf] %vm512, %v488
      %522 = vst.msk [vmem:[%s170 + $0x24] sm:$0xf] %vm512, %v489
      %523 = vst.msk [vmem:[%s170 + $0x28] sm:$0xf] %vm512, %v490
      %524 = vst.msk [vmem:[%s170 + $0x2c] sm:$0xf] %vm512, %v491
      %525 = vst.msk [vmem:[%s170 + $0x30] sm:$0xf] %vm512, %v492
      %526 = vst.msk [vmem:[%s170 + $0x34] sm:$0xf] %vm512, %v493
      %527 = vst.msk [vmem:[%s170 + $0x38] sm:$0xf] %vm512, %v494
      %528 = vst.msk [vmem:[%s170 + $0x3c] sm:$0xf] %vm512, %v495
      %529 = vst.msk [vmem:[%s170 + $0x40] sm:$0xf] %vm512, %v496
      %530 = vst.msk [vmem:[%s170 + $0x44] sm:$0xf] %vm512, %v497
      %531 = vst.msk [vmem:[%s170 + $0x48] sm:$0xf] %vm512, %v498
      %532 = vst.msk [vmem:[%s170 + $0x4c] sm:$0xf] %vm512, %v499
      %533 = vst.msk [vmem:[%s170 + $0x50] sm:$0xf] %vm512, %v500
      %534 = vst.msk [vmem:[%s170 + $0x54] sm:$0xf] %vm512, %v501
      %535 = vst.msk [vmem:[%s170 + $0x58] sm:$0xf] %vm512, %v502
      %536 = vst.msk [vmem:[%s170 + $0x5c] sm:$0xf] %vm512, %v503
      %537 = vst.msk [vmem:[%s170 + $0x60] sm:$0xf] %vm512, %v504
      %538 = vst.msk [vmem:[%s170 + $0x64] sm:$0xf] %vm512, %v505
      %539 = vst.msk [vmem:[%s170 + $0x68] sm:$0xf] %vm512, %v506
      %540 = vst.msk [vmem:[%s170 + $0x6c] sm:$0xf] %vm512, %v507
      %541 = vst.msk [vmem:[%s170 + $0x70] sm:$0xf] %vm512, %v508
      %542 = vst.msk [vmem:[%s170 + $0x74] sm:$0xf] %vm512, %v509
      %543 = vst.msk [vmem:[%s170 + $0x78] sm:$0xf] %vm512, %v510
      %544 = vst.msk [vmem:[%s170 + $0x7c] sm:$0xf] %vm512, %v511
      %p545 = scmp.lt.s32.totalorder %s14, 1
      %s546 = scalar_select %p545, %s14, 1
      %s547 = smul.addr %s546, 32
      %s548 = smul.addr %s547, 4
      %s549 = scalar_lea.vmem %s3, %s548
      // Predicated region
      $region33: #{tpu_custom_call.1} parent=31 // pred_check
        %p550 = pneg %p100
      $region34: #{tpu_custom_call.1} parent=31 // pred_check_branch
        %552 = sbr.rel (%p550) target = $region36
      $region35: #{tpu_custom_call.1} parent=31 // pred_region
        _
      $region36: #{tpu_custom_call.1} parent=31 // pred_fallthru
        _
    $region32: #{tpu_custom_call.1} parent=5 // pred_fallthru
      _
    %p553 = scmp.le.s32.totalorder 2, %s9
    // Predicated region
    $region37: #{tpu_custom_call.1} parent=5 // pred_check
      %p554 = pneg %p553
    $region38: #{tpu_custom_call.1} parent=5 // pred_check_branch
      %556 = sbr.rel (%p554) target = $region40
    $region39: #{tpu_custom_call.1} parent=5 // pred_region
      %s557 = ssub.s32 %s9, 2
      // Predicated region
      $region41: #{tpu_custom_call.1} parent=39 // pred_check
        %p558 = pneg %p106
      $region42: #{tpu_custom_call.1} parent=39 // pred_check_branch
        %560 = sbr.rel (%p558) target = $region44
      $region43: #{tpu_custom_call.1} parent=39 // pred_region
        %p561 = scmp.lt.s32.totalorder %s15, 1
        %s562 = scalar_select %p561, %s15, 1
        %s563 = smul.addr %s562, 32
        %s564 = smul.addr %s563, 4
        %s565 = scalar_lea.vmem %s3, %s564
      $region44: #{tpu_custom_call.1} parent=39 // pred_fallthru
        _
    $region40: #{tpu_custom_call.1} parent=5 // pred_fallthru
      _
  $region6: #{tpu_custom_call.1} parent=0 // loop_footer
    %s13 = sadd.s32 1, %s9
  $region7: #{tpu_custom_call.1} parent=0 // loop_footer_branch
    %8 = sbr.rel target = $region3
  $region8: #{tpu_custom_call.1} parent=0 // loop_exit
    _

</llo_original>
